<compile_context>
chip_gen: v7x
topology: tpu7x:2x2x1
jax: 0.10.0
libtpu: 0.0.40
codegen_flags: <defaults>
</compile_context>

<pallas_src>
import jax
import jax.numpy as jnp
from jax import lax
from jax.experimental import pallas as pl
from jax.experimental.pallas import tpu as pltpu

EPS = 1e-3  # ChannelNorm2d eps (matches the PyTorch default)


def _make_filtering_kernel(H, W, Cin, Cout, Chid):
    HW = H * W
    NPC = 5  # plain per-channel columns: [b_conv, cn_gamma, cn_beta, b_proj, b_se2]

    def kernel(x_ref, wconv_ref, wproj_ref, cp_ref, bse1_ref, film_ref,
               out_ref, im2col_ref):
        # x_ref block: (1, Cin, L) with L = H*W + 2*(W+1)  (flat row-major image,
        # zero-padded so the row halo is real zeros; column halo handled by masks).
        x = x_ref[0]                                        # (Cin, L)
        cdt = x.dtype

        # Column-validity masks (only the dw = +-1 taps need them).
        col = lax.broadcasted_iota(jnp.int32, (1, HW), 1) % W
        not_left = (col >= 1).astype(cdt)                   # source col w-1 valid
        not_right = (col <= W - 2).astype(cdt)              # source col w+1 valid

        # --- im2col: 9 shifted views of the flat image, tap-major / channel-minor ---
        center = None
        for dh in (-1, 0, 1):
            for dw in (-1, 0, 1):
                k = (dh + 1) * 3 + (dw + 1)
                s = (1 + dh) * W + dw + 1                   # static lane offset
                slab = x[:, s:s + HW]                       # (Cin, HW)
                if dw == -1:
                    slab = slab * not_left
                elif dw == 1:
                    slab = slab * not_right
                else:
                    if dh == 0:
                        center = slab                       # un-shifted input (for 1x1 proj)
                im2col_ref[k * Cin:(k + 1) * Cin, :] = slab

        # --- 3x3 conv as a single MXU matmul, f32 accumulation ---
        acc = jnp.dot(wconv_ref[...], im2col_ref[...],
                      preferred_element_type=jnp.float32)   # (Cout, HW)
        acc = acc + cp_ref[:, 0:1]                          # + b_conv (column bcast)

        # --- ChannelNorm2d over the channel (sublane) axis: one-pass sums ---
        s1 = jnp.sum(acc, axis=0, keepdims=True)            # (1, HW)
        s2 = jnp.sum(acc * acc, axis=0, keepdims=True)
        mean = s1 * (1.0 / Cout)
        var = (s2 - Cout * mean * mean) * (1.0 / (Cout - 1))   # Bessel-corrected
        inv_std = pl.reciprocal(jnp.sqrt(var) + EPS, approx=True)  # EUP slot
        y = (acc - mean) * inv_std
        y = y * cp_ref[:, 1:2] + cp_ref[:, 2:3]             # ChannelNorm affine
        y = jnp.maximum(y, 0.0)                             # ReLU

        # --- FiLM: per-sample gamma/beta ---
        film = film_ref[0]                                  # (Cout, 2)
        y = y * film[:, 0:1] + film[:, 1:2]

        # --- SE: global pool -> FC -> ReLU -> FC -> sigmoid -> scale (VPU only) ---
        pooled = jnp.sum(y, axis=1, keepdims=True) * (1.0 / HW)      # (Cout, 1)
        w_se1 = cp_ref[:, NPC:NPC + Chid]                   # (Cout, Chid)
        w_se2t = cp_ref[:, NPC + Chid:NPC + 2 * Chid]       # (Cout, Chid) = w_se2.T
        h1 = jnp.maximum(jnp.sum(pooled * w_se1, axis=0, keepdims=True)
                         + bse1_ref[...], 0.0)              # (1, Chid)
        scale = jax.nn.sigmoid(jnp.sum(w_se2t * h1, axis=1, keepdims=True)
                               + cp_ref[:, 4:5])            # (Cout, 1)
        y = y * scale

        # --- 1x1 residual projection (reuses the center tap), add, final ReLU ---
        res = jnp.dot(wproj_ref[...], center,
                      preferred_element_type=jnp.float32) + cp_ref[:, 3:4]
        out_ref[0] = jnp.maximum(y + res, 0.0)              # (Cout, HW) lane-dense store

    return kernel


def filtering_block(x_nchw, params, gamma=None, beta=None, use_bf16=False):
    """PyTorch-equivalent forward. x_nchw: [N, Cin, H, W] float32 -> [N, Cout, H, W]."""
    N, Cin, H, W = x_nchw.shape
    Cout = params["w_conv"].shape[-1]
    Chid = params["w_se1"].shape[-1]
    HW = H * W
    L = HW + 2 * (W + 1)
    cdt = jnp.bfloat16 if use_bf16 else jnp.float32

    # NCHW stays NCHW; flatten spatial (free reshape) and add a single flat zero pad
    # of (W+1) on each side, which provides the top/bottom halo rows for the 3x3 conv.
    x_flat = x_nchw.astype(cdt).reshape(N, Cin, HW)
    x_pad = jnp.pad(x_flat, ((0, 0), (0, 0), (W + 1, W + 1)))          # (N, Cin, L)

    # Conv weight as (Cout, 9*Cin), tap-major / channel-minor (matches im2col order).
    w9 = params["w_conv"].reshape(9, Cin, Cout).astype(cdt)            # [k, c, o]
    wconv_t = jnp.transpose(w9, (2, 0, 1)).reshape(Cout, 9 * Cin)      # [o, k*Cin+c]
    wproj_t = jnp.transpose(params["w_proj"]).astype(cdt)              # (Cout, Cin)

    # Consolidated per-channel parameter columns (always f32 for the VPU math).
    colv = lambda v: v.reshape(Cout, 1).astype(jnp.float32)
    chan_params = jnp.concatenate([
        colv(params["b_conv"]), colv(params["cn_gamma"]), colv(params["cn_beta"]),
        colv(params["b_proj"]), colv(params["b_se2"]),
        params["w_se1"].astype(jnp.float32),                           # (Cout, Chid)
        jnp.transpose(params["w_se2"]).astype(jnp.float32),            # (Cout, Chid)
    ], axis=1)                                                         # (Cout, 5+2*Chid)
    b_se1 = params["b_se1"].reshape(1, Chid).astype(jnp.float32)

    if gamma is None or beta is None:                                  # FiLM identity
        gamma = jnp.ones((N, Cout), jnp.float32)
        beta = jnp.zeros((N, Cout), jnp.float32)
    film = jnp.stack([gamma.astype(jnp.float32),
                      beta.astype(jnp.float32)], axis=-1)              # (N, Cout, 2)

    kernel = _make_filtering_kernel(H, W, Cin, Cout, Chid)

    out_flat = pl.pallas_call(
        kernel,
        out_shape=jax.ShapeDtypeStruct((N, Cout, HW), jnp.float32),
        grid=(N,),
        in_specs=[
            pl.BlockSpec((1, Cin, L), lambda b: (b, 0, 0)),            # padded flat image
            pl.BlockSpec(wconv_t.shape, lambda b: (0, 0)),             # conv weight
            pl.BlockSpec(wproj_t.shape, lambda b: (0, 0)),             # 1x1 proj weight
            pl.BlockSpec(chan_params.shape, lambda b: (0, 0)),         # stacked channel params
            pl.BlockSpec(b_se1.shape, lambda b: (0, 0)),               # SE hidden bias
            pl.BlockSpec((1, Cout, 2), lambda b: (b, 0, 0)),           # per-sample FiLM
        ],
        out_specs=pl.BlockSpec((1, Cout, HW), lambda b: (b, 0, 0)),
        scratch_shapes=[pltpu.VMEM((9 * Cin, HW), cdt)],               # im2col scratch
        compiler_params=pltpu.CompilerParams(dimension_semantics=("parallel",)),
    )(x_pad, wconv_t, wproj_t, chan_params, b_se1, film)

    return out_flat.reshape(N, Cout, H, W)                             # free reshape (NCHW)


def reference(x_nchw, params, gamma, beta):
    """Pure-JAX reference of the PyTorch forward (for the correctness check)."""
    x = jnp.transpose(x_nchw, (0, 2, 3, 1))
    Cout = params["w_conv"].shape[-1]
    conv = lax.conv_general_dilated(
        x, params["w_conv"], (1, 1), "SAME",
        dimension_numbers=("NHWC", "HWIO", "NHWC")) + params["b_conv"]
    mean = conv.mean(-1, keepdims=True)
    var = jnp.sum((conv - mean) ** 2, axis=-1, keepdims=True) / (Cout - 1)
    y = (conv - mean) / (jnp.sqrt(var) + EPS)
    y = y * params["cn_gamma"] + params["cn_beta"]
    y = jnp.maximum(y, 0.0)
    y = y * gamma[:, None, None, :] + beta[:, None, None, :]
    pooled = y.mean((1, 2))
    h = jnp.maximum(pooled @ params["w_se1"] + params["b_se1"], 0.0)
    s = jax.nn.sigmoid(h @ params["w_se2"] + params["b_se2"])
    y = y * s[:, None, None, :]
    res = jnp.einsum("nhwc,cd->nhwd", x, params["w_proj"]) + params["b_proj"]
    out = jnp.maximum(y + res, 0.0)
    return jnp.transpose(out, (0, 3, 1, 2))


if __name__ == "__main__":
    key = jax.random.PRNGKey(0)
    N, Cin, Cout, H, W = 2, 4, 16, 16, 16
    Chid = Cout // 8                                      # SE reduction_ratio = 8
    ks = jax.random.split(key, 11)

    x = jax.random.normal(ks[0], (N, Cin, H, W), jnp.float32)
    gamma = 1.0 + 0.1 * jax.random.normal(ks[1], (N, Cout), jnp.float32)
    beta = 0.1 * jax.random.normal(ks[2], (N, Cout), jnp.float32)

    params = dict(
        w_conv=0.2 * jax.random.normal(ks[3], (3, 3, Cin, Cout), jnp.float32),  # HWIO
        b_conv=0.1 * jax.random.normal(ks[4], (Cout,), jnp.float32),
        cn_gamma=jnp.ones((Cout,), jnp.float32),          # ChannelNorm2d init
        cn_beta=jnp.zeros((Cout,), jnp.float32),
        w_se1=0.3 * jax.random.normal(ks[5], (Cout, Chid), jnp.float32),
        b_se1=0.1 * jax.random.normal(ks[6], (Chid,), jnp.float32),
        w_se2=0.3 * jax.random.normal(ks[7], (Chid, Cout), jnp.float32),
        b_se2=0.1 * jax.random.normal(ks[8], (Cout,), jnp.float32),
        w_proj=0.3 * jax.random.normal(ks[9], (Cin, Cout), jnp.float32),         # 1x1 conv
        b_proj=0.1 * jax.random.normal(ks[10], (Cout,), jnp.float32),
    )

    run = jax.jit(filtering_block, static_argnames=("use_bf16",))
    ref = reference(x, params, gamma, beta)

    # f32 I/O path. Tolerance deliberately wider than 1e-3 because the channel-norm
    # normalization uses the EUP approximate reciprocal (pl.reciprocal(approx=True));
    # everything else is exact f32.
    out = jax.block_until_ready(run(x, params, gamma, beta))
    assert out.shape == (N, Cout, H, W)
    err = float(jnp.max(jnp.abs(out - ref)))
    if err > 3e-2:
        raise AssertionError(f"f32 kernel/reference mismatch: max abs err = {err}")

    # bf16-I/O path (v6e/v7x HBM+VMEM win): bf16 activations/weights on the DMA & MXU,
    # f32 accumulation and f32 norm/FiLM/SE math; tolerance widened deliberately.
    out_bf16 = jax.block_until_ready(run(x, params, gamma, beta, use_bf16=True))
    err_bf16 = float(jnp.max(jnp.abs(out_bf16 - ref)))
    if err_bf16 > 1.5e-1:
        raise AssertionError(f"bf16 kernel/reference mismatch: max abs err = {err_bf16}")

    print("KERNEL_OK")
</pallas_src>

<mosaic_0001>
module attributes {stable_mosaic.version = 11 : i64} {
  func.func @kernel(%arg0: i32, %arg1: memref<1x4x290xf32, #tpu.memory_space<vmem>>, %arg2: memref<16x36xf32, #tpu.memory_space<vmem>>, %arg3: memref<16x4xf32, #tpu.memory_space<vmem>>, %arg4: memref<16x9xf32, #tpu.memory_space<vmem>>, %arg5: memref<1x2xf32, #tpu.memory_space<vmem>>, %arg6: memref<1x16x2xf32, #tpu.memory_space<vmem>>, %arg7: memref<1x16x256xf32, #tpu.memory_space<vmem>>, %arg8: memref<36x256xf32, #tpu.memory_space<vmem>>) attributes {dimension_semantics = [#tpu.dimension_semantics<parallel>], iteration_bounds = array<i64: 2>, scalar_prefetch = 0 : i64, scratch_operands = 1 : i64, tpu.core_type = #tpu.core_type<tc>, window_params = [{transform_indices = @transform_0, window_bounds = array<i64: 1, 4, 290>}, {pipeline_mode = #tpu.pipeline_mode<synchronous>, transform_indices = @transform_1, window_bounds = array<i64: 16, 36>}, {pipeline_mode = #tpu.pipeline_mode<synchronous>, transform_indices = @transform_2, window_bounds = array<i64: 16, 4>}, {pipeline_mode = #tpu.pipeline_mode<synchronous>, transform_indices = @transform_3, window_bounds = array<i64: 16, 9>}, {pipeline_mode = #tpu.pipeline_mode<synchronous>, transform_indices = @transform_4, window_bounds = array<i64: 1, 2>}, {transform_indices = @transform_5, window_bounds = array<i64: 1, 16, 2>}, {transform_indices = @transform_6, window_bounds = array<i64: 1, 16, 256>}]} {
    %c0 = arith.constant 0 : index
    %c0_0 = arith.constant 0 : index
    %c0_1 = arith.constant 0 : index
    %0 = vector.load %arg1[%c0, %c0_0, %c0_1] : memref<1x4x290xf32, #tpu.memory_space<vmem>>, vector<1x4x290xf32>
    %1 = vector.shape_cast %0 : vector<1x4x290xf32> to vector<4x290xf32>
    %2 = tpu.iota {dimensions = array<i32: 1>} : vector<1x256xi32>
    %c16_i32 = arith.constant 16 : i32
    %c0_i32 = arith.constant 0 : i32
    %3 = arith.cmpi eq, %c16_i32, %c0_i32 : i32
    %c1_i32 = arith.constant 1 : i32
    %4 = arith.select %3, %c1_i32, %c16_i32 : i32
    %5 = vector.broadcast %4 : i32 to vector<1x256xi32>
    %6 = arith.remsi %2, %5 : vector<1x256xi32>
    %c0_i32_2 = arith.constant 0 : i32
    %7 = vector.broadcast %c0_i32_2 : i32 to vector<1x256xi32>
    %8 = arith.cmpi ne, %6, %7 : vector<1x256xi32>
    %c0_i32_3 = arith.constant 0 : i32
    %9 = vector.broadcast %c0_i32_3 : i32 to vector<1x256xi32>
    %10 = arith.cmpi slt, %6, %9 : vector<1x256xi32>
    %c0_i32_4 = arith.constant 0 : i32
    %11 = arith.cmpi slt, %4, %c0_i32_4 : i32
    %12 = vector.broadcast %11 : i1 to vector<1x256xi1>
    %13 = vector.broadcast %12 : vector<1x256xi1> to vector<1x256xi1>
    %14 = arith.xori %10, %13 : vector<1x256xi1>
    %15 = arith.andi %14, %8 : vector<1x256xi1>
    %16 = vector.broadcast %4 : i32 to vector<1x256xi32>
    %17 = arith.addi %6, %16 : vector<1x256xi32>
    %18 = arith.select %15, %17, %6 : vector<1x256xi1>, vector<1x256xi32>
    %c1_i32_5 = arith.constant 1 : i32
    %19 = vector.broadcast %c1_i32_5 : i32 to vector<1x256xi32>
    %20 = arith.cmpi sge, %18, %19 : vector<1x256xi32>
    %21 = arith.extui %20 : vector<1x256xi1> to vector<1x256xi32>
    %22 = arith.sitofp %21 : vector<1x256xi32> to vector<1x256xf32>
    %c14_i32 = arith.constant 14 : i32
    %23 = vector.broadcast %c14_i32 : i32 to vector<1x256xi32>
    %24 = arith.cmpi sle, %18, %23 : vector<1x256xi32>
    %25 = arith.extui %24 : vector<1x256xi1> to vector<1x256xi32>
    %26 = arith.sitofp %25 : vector<1x256xi32> to vector<1x256xf32>
    %27 = vector.extract_strided_slice %1 {offsets = [0, 0], sizes = [4, 256], strides = [1, 1]} : vector<4x290xf32> to vector<4x256xf32>
    %28 = vector.broadcast %22 : vector<1x256xf32> to vector<4x256xf32>
    %29 = arith.mulf %27, %28 : vector<4x256xf32>
    %c0_6 = arith.constant 0 : index
    %c0_7 = arith.constant 0 : index
    %30 = vector.load %arg8[%c0_6, %c0_7] : memref<36x256xf32, #tpu.memory_space<vmem>>, vector<4x256xf32>
    tpu.vector_store %arg8[%c0_6, %c0_7], %29 {strides = array<i32>} : memref<36x256xf32, #tpu.memory_space<vmem>>, vector<4x256xf32>,
    %31 = vector.extract_strided_slice %1 {offsets = [0, 1], sizes = [4, 256], strides = [1, 1]} : vector<4x290xf32> to vector<4x256xf32>
    %c4 = arith.constant 4 : index
    %c0_8 = arith.constant 0 : index
    %32 = vector.load %arg8[%c4, %c0_8] : memref<36x256xf32, #tpu.memory_space<vmem>>, vector<4x256xf32>
    tpu.vector_store %arg8[%c4, %c0_8], %31 {strides = array<i32>} : memref<36x256xf32, #tpu.memory_space<vmem>>, vector<4x256xf32>,
    %33 = vector.extract_strided_slice %1 {offsets = [0, 2], sizes = [4, 256], strides = [1, 1]} : vector<4x290xf32> to vector<4x256xf32>
    %34 = vector.broadcast %26 : vector<1x256xf32> to vector<4x256xf32>
    %35 = arith.mulf %33, %34 : vector<4x256xf32>
    %c8 = arith.constant 8 : index
    %c0_9 = arith.constant 0 : index
    %36 = vector.load %arg8[%c8, %c0_9] : memref<36x256xf32, #tpu.memory_space<vmem>>, vector<4x256xf32>
    tpu.vector_store %arg8[%c8, %c0_9], %35 {strides = array<i32>} : memref<36x256xf32, #tpu.memory_space<vmem>>, vector<4x256xf32>,
    %37 = vector.extract_strided_slice %1 {offsets = [0, 16], sizes = [4, 256], strides = [1, 1]} : vector<4x290xf32> to vector<4x256xf32>
    %38 = vector.broadcast %22 : vector<1x256xf32> to vector<4x256xf32>
    %39 = arith.mulf %37, %38 : vector<4x256xf32>
    %c12 = arith.constant 12 : index
    %c0_10 = arith.constant 0 : index
    %40 = vector.load %arg8[%c12, %c0_10] : memref<36x256xf32, #tpu.memory_space<vmem>>, vector<4x256xf32>
    tpu.vector_store %arg8[%c12, %c0_10], %39 {strides = array<i32>} : memref<36x256xf32, #tpu.memory_space<vmem>>, vector<4x256xf32>,
    %41 = vector.extract_strided_slice %1 {offsets = [0, 17], sizes = [4, 256], strides = [1, 1]} : vector<4x290xf32> to vector<4x256xf32>
    %c16 = arith.constant 16 : index
    %c0_11 = arith.constant 0 : index
    %42 = vector.load %arg8[%c16, %c0_11] : memref<36x256xf32, #tpu.memory_space<vmem>>, vector<4x256xf32>
    tpu.vector_store %arg8[%c16, %c0_11], %41 {strides = array<i32>} : memref<36x256xf32, #tpu.memory_space<vmem>>, vector<4x256xf32>,
    %43 = vector.extract_strided_slice %1 {offsets = [0, 18], sizes = [4, 256], strides = [1, 1]} : vector<4x290xf32> to vector<4x256xf32>
    %44 = vector.broadcast %26 : vector<1x256xf32> to vector<4x256xf32>
    %45 = arith.mulf %43, %44 : vector<4x256xf32>
    %c20 = arith.constant 20 : index
    %c0_12 = arith.constant 0 : index
    %46 = vector.load %arg8[%c20, %c0_12] : memref<36x256xf32, #tpu.memory_space<vmem>>, vector<4x256xf32>
    tpu.vector_store %arg8[%c20, %c0_12], %45 {strides = array<i32>} : memref<36x256xf32, #tpu.memory_space<vmem>>, vector<4x256xf32>,
    %47 = vector.extract_strided_slice %1 {offsets = [0, 32], sizes = [4, 256], strides = [1, 1]} : vector<4x290xf32> to vector<4x256xf32>
    %48 = vector.broadcast %22 : vector<1x256xf32> to vector<4x256xf32>
    %49 = arith.mulf %47, %48 : vector<4x256xf32>
    %c24 = arith.constant 24 : index
    %c0_13 = arith.constant 0 : index
    %50 = vector.load %arg8[%c24, %c0_13] : memref<36x256xf32, #tpu.memory_space<vmem>>, vector<4x256xf32>
    tpu.vector_store %arg8[%c24, %c0_13], %49 {strides = array<i32>} : memref<36x256xf32, #tpu.memory_space<vmem>>, vector<4x256xf32>,
    %51 = vector.extract_strided_slice %1 {offsets = [0, 33], sizes = [4, 256], strides = [1, 1]} : vector<4x290xf32> to vector<4x256xf32>
    %c28 = arith.constant 28 : index
    %c0_14 = arith.constant 0 : index
    %52 = vector.load %arg8[%c28, %c0_14] : memref<36x256xf32, #tpu.memory_space<vmem>>, vector<4x256xf32>
    tpu.vector_store %arg8[%c28, %c0_14], %51 {strides = array<i32>} : memref<36x256xf32, #tpu.memory_space<vmem>>, vector<4x256xf32>,
    %53 = vector.extract_strided_slice %1 {offsets = [0, 34], sizes = [4, 256], strides = [1, 1]} : vector<4x290xf32> to vector<4x256xf32>
    %54 = vector.broadcast %26 : vector<1x256xf32> to vector<4x256xf32>
    %55 = arith.mulf %53, %54 : vector<4x256xf32>
    %c32 = arith.constant 32 : index
    %c0_15 = arith.constant 0 : index
    %56 = vector.load %arg8[%c32, %c0_15] : memref<36x256xf32, #tpu.memory_space<vmem>>, vector<4x256xf32>
    tpu.vector_store %arg8[%c32, %c0_15], %55 {strides = array<i32>} : memref<36x256xf32, #tpu.memory_space<vmem>>, vector<4x256xf32>,
    %c0_16 = arith.constant 0 : index
    %c0_17 = arith.constant 0 : index
    %57 = vector.load %arg2[%c0_16, %c0_17] : memref<16x36xf32, #tpu.memory_space<vmem>>, vector<16x36xf32>
    %c0_18 = arith.constant 0 : index
    %c0_19 = arith.constant 0 : index
    %58 = vector.load %arg8[%c0_18, %c0_19] : memref<36x256xf32, #tpu.memory_space<vmem>>, vector<36x256xf32>
    %cst = arith.constant dense<0.000000e+00> : vector<16x256xf32>
    %59 = tpu.matmul %57, %58, %cst {dimension_numbers = #tpu.dot_dimension_numbers<[1], [0], [0], [1], [0, 0, 1, 1], [], []>} : vector<16x36xf32>, vector<36x256xf32>, vector<16x256xf32> -> vector<16x256xf32>
    %c0_20 = arith.constant 0 : index
    %c0_21 = arith.constant 0 : index
    %60 = vector.load %arg4[%c0_20, %c0_21] : memref<16x9xf32, #tpu.memory_space<vmem>>, vector<16x1xf32>
    %61 = vector.broadcast %60 : vector<16x1xf32> to vector<16x256xf32>
    %62 = arith.addf %59, %61 : vector<16x256xf32>
    %cst_22 = arith.constant dense<0.000000e+00> : vector<256xf32>
    %63 = vector.multi_reduction <add>, %62, %cst_22 [0] : vector<16x256xf32> to vector<256xf32>
    %64 = vector.shape_cast %63 : vector<256xf32> to vector<1x256xf32>
    %65 = arith.mulf %62, %62 : vector<16x256xf32>
    %cst_23 = arith.constant dense<0.000000e+00> : vector<256xf32>
    %66 = vector.multi_reduction <add>, %65, %cst_23 [0] : vector<16x256xf32> to vector<256xf32>
    %67 = vector.shape_cast %66 : vector<256xf32> to vector<1x256xf32>
    %cst_24 = arith.constant 6.250000e-02 : f32
    %68 = vector.broadcast %cst_24 : f32 to vector<1x256xf32>
    %69 = arith.mulf %64, %68 : vector<1x256xf32>
    %cst_25 = arith.constant 1.600000e+01 : f32
    %70 = vector.broadcast %cst_25 : f32 to vector<1x256xf32>
    %71 = arith.mulf %70, %69 : vector<1x256xf32>
    %72 = arith.mulf %71, %69 : vector<1x256xf32>
    %73 = arith.subf %67, %72 : vector<1x256xf32>
    %cst_26 = arith.constant 0.0666666701 : f32
    %74 = vector.broadcast %cst_26 : f32 to vector<1x256xf32>
    %75 = arith.mulf %73, %74 : vector<1x256xf32>
    %76 = math.sqrt %75 : vector<1x256xf32>
    %cst_27 = arith.constant 1.000000e-03 : f32
    %77 = vector.broadcast %cst_27 : f32 to vector<1x256xf32>
    %78 = arith.addf %76, %77 : vector<1x256xf32>
    %79 = tpu.reciprocal %78 {approx = true} : vector<1x256xf32> -> vector<1x256xf32>
    %80 = vector.broadcast %69 : vector<1x256xf32> to vector<16x256xf32>
    %81 = arith.subf %62, %80 : vector<16x256xf32>
    %82 = vector.broadcast %79 : vector<1x256xf32> to vector<16x256xf32>
    %83 = arith.mulf %81, %82 : vector<16x256xf32>
    %c0_28 = arith.constant 0 : index
    %c1 = arith.constant 1 : index
    %84 = vector.load %arg4[%c0_28, %c1] : memref<16x9xf32, #tpu.memory_space<vmem>>, vector<16x1xf32>
    %85 = vector.broadcast %84 : vector<16x1xf32> to vector<16x256xf32>
    %86 = arith.mulf %83, %85 : vector<16x256xf32>
    %c0_29 = arith.constant 0 : index
    %c2 = arith.constant 2 : index
    %87 = vector.load %arg4[%c0_29, %c2] : memref<16x9xf32, #tpu.memory_space<vmem>>, vector<16x1xf32>
    %88 = vector.broadcast %87 : vector<16x1xf32> to vector<16x256xf32>
    %89 = arith.addf %86, %88 : vector<16x256xf32>
    %cst_30 = arith.constant 0.000000e+00 : f32
    %90 = vector.broadcast %cst_30 : f32 to vector<16x256xf32>
    %91 = arith.maximumf %89, %90 : vector<16x256xf32>
    %c0_31 = arith.constant 0 : index
    %c0_32 = arith.constant 0 : index
    %c0_33 = arith.constant 0 : index
    %92 = vector.load %arg6[%c0_31, %c0_32, %c0_33] : memref<1x16x2xf32, #tpu.memory_space<vmem>>, vector<1x16x2xf32>
    %93 = vector.shape_cast %92 : vector<1x16x2xf32> to vector<16x2xf32>
    %94 = vector.extract_strided_slice %93 {offsets = [0, 0], sizes = [16, 1], strides = [1, 1]} : vector<16x2xf32> to vector<16x1xf32>
    %95 = vector.broadcast %94 : vector<16x1xf32> to vector<16x256xf32>
    %96 = arith.mulf %91, %95 : vector<16x256xf32>
    %97 = vector.extract_strided_slice %93 {offsets = [0, 1], sizes = [16, 1], strides = [1, 1]} : vector<16x2xf32> to vector<16x1xf32>
    %98 = vector.broadcast %97 : vector<16x1xf32> to vector<16x256xf32>
    %99 = arith.addf %96, %98 : vector<16x256xf32>
    %cst_34 = arith.constant dense<0.000000e+00> : vector<16xf32>
    %100 = vector.multi_reduction <add>, %99, %cst_34 [1] : vector<16x256xf32> to vector<16xf32>
    %101 = vector.shape_cast %100 : vector<16xf32> to vector<16x1xf32>
    %cst_35 = arith.constant 3.906250e-03 : f32
    %102 = vector.broadcast %cst_35 : f32 to vector<16x1xf32>
    %103 = arith.mulf %101, %102 : vector<16x1xf32>
    %c0_36 = arith.constant 0 : index
    %c5 = arith.constant 5 : index
    %104 = vector.load %arg4[%c0_36, %c5] : memref<16x9xf32, #tpu.memory_space<vmem>>, vector<16x2xf32>
    %c0_37 = arith.constant 0 : index
    %c7 = arith.constant 7 : index
    %105 = vector.load %arg4[%c0_37, %c7] : memref<16x9xf32, #tpu.memory_space<vmem>>, vector<16x2xf32>
    %106 = vector.broadcast %103 : vector<16x1xf32> to vector<16x2xf32>
    %107 = arith.mulf %106, %104 : vector<16x2xf32>
    %cst_38 = arith.constant dense<0.000000e+00> : vector<2xf32>
    %108 = vector.multi_reduction <add>, %107, %cst_38 [0] : vector<16x2xf32> to vector<2xf32>
    %109 = vector.shape_cast %108 : vector<2xf32> to vector<1x2xf32>
    %c0_39 = arith.constant 0 : index
    %c0_40 = arith.constant 0 : index
    %110 = vector.load %arg5[%c0_39, %c0_40] : memref<1x2xf32, #tpu.memory_space<vmem>>, vector<1x2xf32>
    %111 = arith.addf %109, %110 : vector<1x2xf32>
    %cst_41 = arith.constant 0.000000e+00 : f32
    %112 = vector.broadcast %cst_41 : f32 to vector<1x2xf32>
    %113 = arith.maximumf %111, %112 : vector<1x2xf32>
    %114 = vector.broadcast %113 : vector<1x2xf32> to vector<16x2xf32>
    %115 = arith.mulf %105, %114 : vector<16x2xf32>
    %cst_42 = arith.constant dense<0.000000e+00> : vector<16xf32>
    %116 = vector.multi_reduction <add>, %115, %cst_42 [1] : vector<16x2xf32> to vector<16xf32>
    %117 = vector.shape_cast %116 : vector<16xf32> to vector<16x1xf32>
    %c0_43 = arith.constant 0 : index
    %c4_44 = arith.constant 4 : index
    %118 = vector.load %arg4[%c0_43, %c4_44] : memref<16x9xf32, #tpu.memory_space<vmem>>, vector<16x1xf32>
    %119 = arith.addf %117, %118 : vector<16x1xf32>
    %120 = arith.negf %119 : vector<16x1xf32>
    %121 = math.exp %120 : vector<16x1xf32>
    %cst_45 = arith.constant 1.000000e+00 : f32
    %122 = vector.broadcast %cst_45 : f32 to vector<16x1xf32>
    %123 = arith.addf %122, %121 : vector<16x1xf32>
    %124 = arith.divf %122, %123 : vector<16x1xf32>
    %125 = vector.broadcast %124 : vector<16x1xf32> to vector<16x256xf32>
    %126 = arith.mulf %99, %125 : vector<16x256xf32>
    %c0_46 = arith.constant 0 : index
    %c0_47 = arith.constant 0 : index
    %127 = vector.load %arg3[%c0_46, %c0_47] : memref<16x4xf32, #tpu.memory_space<vmem>>, vector<16x4xf32>
    %cst_48 = arith.constant dense<0.000000e+00> : vector<16x256xf32>
    %128 = tpu.matmul %127, %41, %cst_48 {dimension_numbers = #tpu.dot_dimension_numbers<[1], [0], [0], [1], [0, 0, 1, 1], [], []>} : vector<16x4xf32>, vector<4x256xf32>, vector<16x256xf32> -> vector<16x256xf32>
    %c0_49 = arith.constant 0 : index
    %c3 = arith.constant 3 : index
    %129 = vector.load %arg4[%c0_49, %c3] : memref<16x9xf32, #tpu.memory_space<vmem>>, vector<16x1xf32>
    %130 = vector.broadcast %129 : vector<16x1xf32> to vector<16x256xf32>
    %131 = arith.addf %128, %130 : vector<16x256xf32>
    %132 = arith.addf %126, %131 : vector<16x256xf32>
    %cst_50 = arith.constant 0.000000e+00 : f32
    %133 = vector.broadcast %cst_50 : f32 to vector<16x256xf32>
    %134 = arith.maximumf %132, %133 : vector<16x256xf32>
    %c0_51 = arith.constant 0 : index
    %c0_52 = arith.constant 0 : index
    %c0_53 = arith.constant 0 : index
    %135 = vector.load %arg7[%c0_51, %c0_52, %c0_53] : memref<1x16x256xf32, #tpu.memory_space<vmem>>, vector<1x16x256xf32>
    %136 = vector.shape_cast %135 : vector<1x16x256xf32> to vector<16x256xf32>
    %137 = vector.shape_cast %134 : vector<16x256xf32> to vector<1x16x256xf32>
    tpu.vector_store %arg7[%c0_51, %c0_52, %c0_53], %137 {strides = array<i32>} : memref<1x16x256xf32, #tpu.memory_space<vmem>>, vector<1x16x256xf32>,
    return
  }
  func.func @transform_0(%arg0: i32) -> (i32, i32, i32) {
    %c0_i32 = arith.constant 0 : i32
    %c0_i32_0 = arith.constant 0 : i32
    %c0_i32_1 = arith.constant 0 : i32
    return %arg0, %c0_i32, %c0_i32_0 : i32, i32, i32
  }
  func.func @transform_1(%arg0: i32) -> (i32, i32) {
    %c0_i32 = arith.constant 0 : i32
    %c0_i32_0 = arith.constant 0 : i32
    %c0_i32_1 = arith.constant 0 : i32
    return %c0_i32, %c0_i32_0 : i32, i32
  }
  func.func @transform_2(%arg0: i32) -> (i32, i32) {
    %c0_i32 = arith.constant 0 : i32
    %c0_i32_0 = arith.constant 0 : i32
    %c0_i32_1 = arith.constant 0 : i32
    return %c0_i32, %c0_i32_0 : i32, i32
  }
  func.func @transform_3(%arg0: i32) -> (i32, i32) {
    %c0_i32 = arith.constant 0 : i32
    %c0_i32_0 = arith.constant 0 : i32
    %c0_i32_1 = arith.constant 0 : i32
    return %c0_i32, %c0_i32_0 : i32, i32
  }
  func.func @transform_4(%arg0: i32) -> (i32, i32) {
    %c0_i32 = arith.constant 0 : i32
    %c0_i32_0 = arith.constant 0 : i32
    %c0_i32_1 = arith.constant 0 : i32
    return %c0_i32, %c0_i32_0 : i32, i32
  }
  func.func @transform_5(%arg0: i32) -> (i32, i32, i32) {
    %c0_i32 = arith.constant 0 : i32
    %c0_i32_0 = arith.constant 0 : i32
    %c0_i32_1 = arith.constant 0 : i32
    return %arg0, %c0_i32, %c0_i32_0 : i32, i32, i32
  }
  func.func @transform_6(%arg0: i32) -> (i32, i32, i32) {
    %c0_i32 = arith.constant 0 : i32
    %c0_i32_0 = arith.constant 0 : i32
    %c0_i32_1 = arith.constant 0 : i32
    return %arg0, %c0_i32, %c0_i32_0 : i32, i32, i32
  }
}

</mosaic_0001>

<llo_original>
// kernel: filtering_block.1
$region0: #{filtering_block.1}
  #allocation0 [shape = 'u32[]', space=smem, size = 0x4, offset = 0x4, fixed_abs, tag = 'smem constant byte address 0x4 - core index']
  #allocation1 [shape = 'u32[144,128]{1,0:T(1,128)}', space=vmem, size = 0x12000, scoped, tag = 'internal scratch']
  #allocation2 [shape = 'f32[36,256]{1,0:T(8,128)}', space=vmem, size = 0xa000, scoped, tag = 'scratch operand']
  %s0 = inlined_call_operand.vmem [shape: f32[2,4,290], index: 0, kind: input, shape index: {}]
  %s1 = inlined_call_operand.vmem [shape: f32[16,36], index: 1, kind: input, shape index: {}]
  %s2 = inlined_call_operand.vmem [shape: f32[16,4], index: 2, kind: input, shape index: {}]
  %s3 = inlined_call_operand.vmem [shape: f32[16,9], index: 3, kind: input, shape index: {}]
  %s4 = inlined_call_operand.vmem [shape: f32[1,2], index: 4, kind: input, shape index: {}]
  %s5 = inlined_call_operand.vmem [shape: f32[2,16,2], index: 5, kind: input, shape index: {}]
  %s6 = inlined_call_operand.vmem [shape: f32[2,16,256], index: 6, kind: output, shape index: {}]
  %s7 = sld [smem:[#allocation0]]
  $region57: #{filtering_block.1} parent=0
    _
  %s9 = ssub.s32 1, %s7
  %s10 = scalar_select 0, %s9, %s7
  loop: start=0, step=1, limit=4
  $region2: #{filtering_block.1} parent=0 // loop_pre_header
    _
  $region3: #{filtering_block.1} parent=0 // loop_header
    %s12 = sphi 0, %s16
    %p13 = scmp.ge.s32.totalorder %s12, 4
    %s22 = sphi 0, %s24
    %s25 = sphi 0, %s22
    %s26 = sphi 0, %s25
    %s42 = sphi 0, %s26
    %s46 = sphi 0, %s46
    %s48 = sphi 0, %s46
    %s49 = sphi 0, %s48
    %s63 = sphi 0, %s49
    %s67 = sphi 0, %s67
    %s69 = sphi 0, %s67
    %s70 = sphi 0, %s69
    %s84 = sphi 0, %s70
    %s88 = sphi 0, %s88
    %s90 = sphi 0, %s88
    %s91 = sphi 0, %s90
    %s105 = sphi 0, %s91
    %s109 = sphi 0, %s109
    %s111 = sphi 0, %s109
    %s112 = sphi 0, %s111
    %s126 = sphi 0, %s112
    %s132 = sphi 0, %s134
    %s135 = sphi 0, %s132
    %s136 = sphi 0, %s135
    %s152 = sphi 0, %s136
    %s158 = sphi 0, %s160
    %s161 = sphi 0, %s158
    %s162 = sphi 0, %s161
    %s178 = sphi 0, %s162
  $region4: #{filtering_block.1} parent=0 // loop_header_branch
    %15 = sbr.rel (%p13) target = $region8
  $region5: #{filtering_block.1} parent=0 // loop_body
    %s17 = ssub.s32 %s12, 1
    %s18 = ssub.s32 %s12, 2
    %s19 = sadd.s32 %s12, 1
    %s20 = ssub.s32 %s12, %s19
    %p21 = scmp.eq.s32.totalorder %s20, 0
    %s23 = sadd.s32 %s22, 1
    %s24 = scalar_select %p21, %s22, %s23
    %p27 = pneg %p21
    %p28 = scmp.eq.s32.totalorder %s12, 1
    %p29 = por %p27, %p28
    %p30 = scmp.ne.s32.totalorder %s22, %s25
    %p31 = scmp.eq.s32.totalorder %s12, 0
    %p32 = por %p30, %p31
    %p33 = scmp.ne.s32.totalorder %s22, %s25
    %p34 = scmp.eq.s32.totalorder %s17, 1
    %p35 = por %p33, %p34
    %p36 = scmp.ne.s32.totalorder %s25, %s26
    %p37 = scmp.eq.s32.totalorder %s17, 0
    %p38 = por %p36, %p37
    %p39 = scmp.ne.s32.totalorder %s25, %s26
    %p40 = scmp.eq.s32.totalorder %s18, 1
    %p41 = por %p39, %p40
    %p43 = scmp.ne.s32.totalorder %s26, %s42
    %p44 = scmp.eq.s32.totalorder %s18, 0
    %p45 = por %p43, %p44
    %s47 = sadd.s32 %s46, 1
    %p50 = scmp.eq.s32.totalorder %s12, 1
    %p51 = scmp.ne.s32.totalorder %s46, %s48
    %p52 = scmp.eq.s32.totalorder %s12, 0
    %p53 = por %p51, %p52
    %p54 = scmp.ne.s32.totalorder %s46, %s48
    %p55 = scmp.eq.s32.totalorder %s17, 1
    %p56 = por %p54, %p55
    %p57 = scmp.ne.s32.totalorder %s48, %s49
    %p58 = scmp.eq.s32.totalorder %s17, 0
    %p59 = por %p57, %p58
    %p60 = scmp.ne.s32.totalorder %s48, %s49
    %p61 = scmp.eq.s32.totalorder %s18, 1
    %p62 = por %p60, %p61
    %p64 = scmp.ne.s32.totalorder %s49, %s63
    %p65 = scmp.eq.s32.totalorder %s18, 0
    %p66 = por %p64, %p65
    %s68 = sadd.s32 %s67, 1
    %p71 = scmp.eq.s32.totalorder %s12, 1
    %p72 = scmp.ne.s32.totalorder %s67, %s69
    %p73 = scmp.eq.s32.totalorder %s12, 0
    %p74 = por %p72, %p73
    %p75 = scmp.ne.s32.totalorder %s67, %s69
    %p76 = scmp.eq.s32.totalorder %s17, 1
    %p77 = por %p75, %p76
    %p78 = scmp.ne.s32.totalorder %s69, %s70
    %p79 = scmp.eq.s32.totalorder %s17, 0
    %p80 = por %p78, %p79
    %p81 = scmp.ne.s32.totalorder %s69, %s70
    %p82 = scmp.eq.s32.totalorder %s18, 1
    %p83 = por %p81, %p82
    %p85 = scmp.ne.s32.totalorder %s70, %s84
    %p86 = scmp.eq.s32.totalorder %s18, 0
    %p87 = por %p85, %p86
    %s89 = sadd.s32 %s88, 1
    %p92 = scmp.eq.s32.totalorder %s12, 1
    %p93 = scmp.ne.s32.totalorder %s88, %s90
    %p94 = scmp.eq.s32.totalorder %s12, 0
    %p95 = por %p93, %p94
    %p96 = scmp.ne.s32.totalorder %s88, %s90
    %p97 = scmp.eq.s32.totalorder %s17, 1
    %p98 = por %p96, %p97
    %p99 = scmp.ne.s32.totalorder %s90, %s91
    %p100 = scmp.eq.s32.totalorder %s17, 0
    %p101 = por %p99, %p100
    %p102 = scmp.ne.s32.totalorder %s90, %s91
    %p103 = scmp.eq.s32.totalorder %s18, 1
    %p104 = por %p102, %p103
    %p106 = scmp.ne.s32.totalorder %s91, %s105
    %p107 = scmp.eq.s32.totalorder %s18, 0
    %p108 = por %p106, %p107
    %s110 = sadd.s32 %s109, 1
    %p113 = scmp.eq.s32.totalorder %s12, 1
    %p114 = scmp.ne.s32.totalorder %s109, %s111
    %p115 = scmp.eq.s32.totalorder %s12, 0
    %p116 = por %p114, %p115
    %p117 = scmp.ne.s32.totalorder %s109, %s111
    %p118 = scmp.eq.s32.totalorder %s17, 1
    %p119 = por %p117, %p118
    %p120 = scmp.ne.s32.totalorder %s111, %s112
    %p121 = scmp.eq.s32.totalorder %s17, 0
    %p122 = por %p120, %p121
    %p123 = scmp.ne.s32.totalorder %s111, %s112
    %p124 = scmp.eq.s32.totalorder %s18, 1
    %p125 = por %p123, %p124
    %p127 = scmp.ne.s32.totalorder %s112, %s126
    %p128 = scmp.eq.s32.totalorder %s18, 0
    %p129 = por %p127, %p128
    %s130 = ssub.s32 %s12, %s19
    %p131 = scmp.eq.s32.totalorder %s130, 0
    %s133 = sadd.s32 %s132, 1
    %s134 = scalar_select %p131, %s132, %s133
    %p137 = pneg %p131
    %p138 = scmp.eq.s32.totalorder %s12, 1
    %p139 = por %p137, %p138
    %p140 = scmp.ne.s32.totalorder %s132, %s135
    %p141 = scmp.eq.s32.totalorder %s12, 0
    %p142 = por %p140, %p141
    %p143 = scmp.ne.s32.totalorder %s132, %s135
    %p144 = scmp.eq.s32.totalorder %s17, 1
    %p145 = por %p143, %p144
    %p146 = scmp.ne.s32.totalorder %s135, %s136
    %p147 = scmp.eq.s32.totalorder %s17, 0
    %p148 = por %p146, %p147
    %p149 = scmp.ne.s32.totalorder %s135, %s136
    %p150 = scmp.eq.s32.totalorder %s18, 1
    %p151 = por %p149, %p150
    %p153 = scmp.ne.s32.totalorder %s136, %s152
    %p154 = scmp.eq.s32.totalorder %s18, 0
    %p155 = por %p153, %p154
    %s156 = ssub.s32 %s12, %s19
    %p157 = scmp.eq.s32.totalorder %s156, 0
    %s159 = sadd.s32 %s158, 1
    %s160 = scalar_select %p157, %s158, %s159
    %p163 = pneg %p157
    %p164 = scmp.eq.s32.totalorder %s12, 1
    %p165 = por %p163, %p164
    %p166 = scmp.ne.s32.totalorder %s158, %s161
    %p167 = scmp.eq.s32.totalorder %s12, 0
    %p168 = por %p166, %p167
    %p169 = scmp.ne.s32.totalorder %s158, %s161
    %p170 = scmp.eq.s32.totalorder %s17, 1
    %p171 = por %p169, %p170
    %p172 = scmp.ne.s32.totalorder %s161, %s162
    %p173 = scmp.eq.s32.totalorder %s17, 0
    %p174 = por %p172, %p173
    %p175 = scmp.ne.s32.totalorder %s161, %s162
    %p176 = scmp.eq.s32.totalorder %s18, 1
    %p177 = por %p175, %p176
    %p179 = scmp.ne.s32.totalorder %s162, %s178
    %p180 = scmp.eq.s32.totalorder %s18, 0
    %p181 = por %p179, %p180
    %p182 = scmp.le.s32.totalorder 1, %s12
    %p183 = scmp.lt.s32.totalorder %s12, 3
    %p184 = pnand %p182, %p183
    %p185 = pneg %p184
    // Predicated region
    $region9: #{filtering_block.1} parent=5 // pred_check
      _
    $region10: #{filtering_block.1} parent=5 // pred_check_branch
      %187 = sbr.rel (%p184) target = $region12
    $region11: #{filtering_block.1} parent=5 // pred_region
      %s188 = ssub.s32 %s12, 1
      // Predicated region
      $region13: #{filtering_block.1} parent=11 // pred_check
        %p189 = pneg %p59
      $region14: #{filtering_block.1} parent=11 // pred_check_branch
        %191 = sbr.rel (%p189) target = $region16
      $region15: #{filtering_block.1} parent=11 // pred_region
        _
      $region16: #{filtering_block.1} parent=11 // pred_fallthru
        _
      // Predicated region
      $region17: #{filtering_block.1} parent=11 // pred_check
        %p192 = pneg %p80
      $region18: #{filtering_block.1} parent=11 // pred_check_branch
        %194 = sbr.rel (%p192) target = $region20
      $region19: #{filtering_block.1} parent=11 // pred_region
        _
      $region20: #{filtering_block.1} parent=11 // pred_fallthru
        _
      // Predicated region
      $region21: #{filtering_block.1} parent=11 // pred_check
        %p195 = pneg %p101
      $region22: #{filtering_block.1} parent=11 // pred_check_branch
        %197 = sbr.rel (%p195) target = $region24
      $region23: #{filtering_block.1} parent=11 // pred_region
        _
      $region24: #{filtering_block.1} parent=11 // pred_fallthru
        _
      // Predicated region
      $region25: #{filtering_block.1} parent=11 // pred_check
        %p198 = pneg %p122
      $region26: #{filtering_block.1} parent=11 // pred_check_branch
        %200 = sbr.rel (%p198) target = $region28
      $region27: #{filtering_block.1} parent=11 // pred_region
        _
      $region28: #{filtering_block.1} parent=11 // pred_fallthru
        _
    $region12: #{filtering_block.1} parent=5 // pred_fallthru
      _
    %p201 = scmp.lt.s32.totalorder %s12, 2
    // Predicated region
    $region29: #{filtering_block.1} parent=5 // pred_check
      %p202 = pneg %p201
    $region30: #{filtering_block.1} parent=5 // pred_check_branch
      %204 = sbr.rel (%p202) target = $region32
    $region31: #{filtering_block.1} parent=5 // pred_region
      // Predicated region
      $region33: #{filtering_block.1} parent=31 // pred_check
        %p205 = pneg %p32
      $region34: #{filtering_block.1} parent=31 // pred_check_branch
        %207 = sbr.rel (%p205) target = $region36
      $region35: #{filtering_block.1} parent=31 // pred_region
        %p208 = scmp.lt.s32.totalorder %s12, 1
        %s209 = scalar_select %p208, %s12, 1
        %s210 = smul.addr %s209, 3
        %s211 = smul.addr %s210, 4
        %s212 = scalar_lea.vmem %s0, %s211
      $region36: #{filtering_block.1} parent=31 // pred_fallthru
        _
      // Predicated region
      $region37: #{filtering_block.1} parent=31 // pred_check
        %p213 = pneg %p142
      $region38: #{filtering_block.1} parent=31 // pred_check_branch
        %215 = sbr.rel (%p213) target = $region40
      $region39: #{filtering_block.1} parent=31 // pred_region
        %p216 = scmp.lt.s32.totalorder %s12, 1
        %s217 = scalar_select %p216, %s12, 1
        %s218 = smul.addr %s217, 2
        %s219 = smul.addr %s218, 8
        %s220 = scalar_lea.vmem %s5, %s219
      $region40: #{filtering_block.1} parent=31 // pred_fallthru
        _
    $region32: #{filtering_block.1} parent=5 // pred_fallthru
      _
    %p221 = scmp.le.s32.totalorder 1, %s12
    %p222 = scmp.lt.s32.totalorder %s12, 3
    %p223 = pnand %p221, %p222
    %p224 = pneg %p223
    // Predicated region
    $region41: #{filtering_block.1} parent=5 // pred_check
      _
    $region42: #{filtering_block.1} parent=5 // pred_check_branch
      %226 = sbr.rel (%p223) target = $region44
    $region43: #{filtering_block.1} parent=5 // pred_region
      %s227 = ssub.s32 %s12, 1
      %p228 = scmp.lt.s32.totalorder %s17, 1
      %s229 = scalar_select %p228, %s17, 1
      %s230 = smul.addr %s229, 3
      %s231 = smul.addr %s230, 4
      %s232 = scalar_lea.vmem %s0, %s231
      %p233 = pneg %p38
      %p234 = pneg %p35
      %p235 = pneg %p59
      %p236 = pneg %p56
      %p237 = pneg %p80
      %p238 = pneg %p77
      %p239 = pneg %p101
      %p240 = pneg %p98
      %p241 = pneg %p122
      %p242 = pneg %p119
      %p243 = scmp.lt.s32.totalorder %s17, 1
      %s244 = scalar_select %p243, %s17, 1
      %s245 = smul.addr %s244, 2
      %s246 = smul.addr %s245, 8
      %s247 = scalar_lea.vmem %s5, %s246
      %p248 = pneg %p148
      %p249 = pneg %p145
      %p250 = pneg %p174
      %p251 = pneg %p171
      %p252 = scmp.lt.s32.totalorder %s17, 1
      %s253 = scalar_select %p252, %s17, 1
      %s254 = smul.addr %s253, 4
      %s255 = smul.addr %s254, 8
      %s256 = scalar_lea.vmem %s6, %s255
      %p257 = scmp.lt.s32.totalorder %s17, 1
      %s258 = scalar_select %p257, %s17, 1
      %s259 = smul.addr %s258, 3
      %s260 = smul.addr %s259, 4
      %s261 = scalar_lea.vmem %s0, %s260
      %p262 = scmp.lt.s32.totalorder %s17, 1
      %s263 = scalar_select %p262, %s17, 1
      %s264 = smul.addr %s263, 2
      %s265 = smul.addr %s264, 8
      %s266 = scalar_lea.vmem %s5, %s265
      %p267 = scmp.lt.s32.totalorder %s17, 1
      %s268 = scalar_select %p267, %s17, 1
      %s269 = smul.addr %s268, 4
      %s270 = smul.addr %s269, 8
      %s271 = scalar_lea.vmem %s6, %s270
      %v272 = vld [vmem:[%s261] sm:$0xff]
      %v273 = vld [vmem:[%s261 + $0x8] sm:$0xf]
      %v274 = vlaneseq
      %v275 = vand.u32 %v274, 127
      %v276 = vadd.s32 %v275, 128
      %vm277 = vcmp.lt.s32.totalorder %v275, 0
      %v278 = vsub.s32 0, %v275
      %v279 = vsel %vm277, %v278, %v275
      %v280 = vshrl.u32 %v279, 4
      %v281 = vand.u32 %v279, 15
      %v282 = vsub.s32 0, %v281
      %v283 = vsel %vm277, %v282, %v281
      %vm284 = vcmp.lt.s32.totalorder %v276, 0
      %v285 = vsub.s32 0, %v276
      %v286 = vsel %vm284, %v285, %v276
      %v287 = vshrl.u32 %v286, 4
      %v288 = vand.u32 %v286, 15
      %v289 = vsub.s32 0, %v288
      %v290 = vsel %vm284, %v289, %v288
      %vm291 = vcmp.ne.s32.totalorder %v283, 0
      %vm292 = vcmp.ne.s32.totalorder %v290, 0
      %vm293 = vcmp.lt.s32.totalorder %v283, 0
      %vm294 = vcmp.lt.s32.totalorder %v290, 0
      %vm295 = vmand %vm293, %vm291
      %vm296 = vmand %vm294, %vm292
      %v297 = vadd.s32 %v283, 16
      %v298 = vadd.s32 %v290, 16
      %v299 = vsel %vm295, %v297, %v283
      %v300 = vsel %vm296, %v298, %v290
      %vm301 = vcmp.ge.s32.totalorder %v299, 1
      %vm302 = vcmp.ge.s32.totalorder %v300, 1
      %v303 = vsel %vm301, 1, 0
      %v304 = vsel %vm302, 1, 0
      %v305 = vcvt.s32.f32 %v303
      %v306 = vcvt.s32.f32 %v304
      %vm307 = vcmp.le.s32.totalorder %v299, 14
      %vm308 = vcmp.le.s32.totalorder %v300, 14
      %v309 = vsel %vm307, 1, 0
      %v310 = vsel %vm308, 1, 0
      %v311 = vcvt.s32.f32 %v309
      %v312 = vcvt.s32.f32 %v310
      %v315 = vcombine.low %v305, %v306
      %v317 = vmul.f32 %v272, %v315
      %v319 = vcombine.high %v317, %v317
      %321 = vst [vmem:[#allocation2] sm:$0xf] %v317
      %322 = vst [vmem:[#allocation2 + $0x8] sm:$0xf] %v319
      %v325 = vcombine.low %v272, %v272
      %v326 = vcombine.low %v273, %v273
      %327 = vrot.lane.b32.xlu0 %v325, 127
      %v328 = vpop.permute.xlu0 %327
      %329 = vrot.lane.b32.xlu0 %v272, 127
      %v330 = vpop.permute.xlu0 %329
      %331 = vrot.lane.b32.xlu0 %v326, 127
      %v332 = vpop.permute.xlu0 %331
      %vm333 = vcmask 1039360
      %v334 = vsel %vm333, %v328, %v330
      %v335 = vsel %vm333, %v330, %v332
      %338 = vst [vmem:[#allocation2] sm:$0xf0] %v334
      %339 = vst [vmem:[#allocation2 + $0x8] sm:$0xf0] %v335
      %v342 = vcombine.low %v311, %v312
      %343 = vrot.lane.b32.xlu0 %v342, 2
      %v344 = vpop.permute.xlu0 %343
      %v345 = vrot.slane %v344, 4
      %vm346 = vcmask 15360
      %v347 = vsel %vm346, %v345, %v344
      %v350 = vmul.f32 %v272, %v347
      %v351 = vmul.f32 %v273, %v345
      %v354 = vcombine.high %v350, %v350
      %355 = vrot.lane.b32.xlu0 %v350, 126
      %v356 = vpop.permute.xlu0 %355
      %357 = vrot.lane.b32.xlu0 %v354, 126
      %v358 = vpop.permute.xlu0 %357
      %359 = vrot.lane.b32.xlu0 %v351, 126
      %v360 = vpop.permute.xlu0 %359
      %vm361 = vcmask 1031168
      %v362 = vsel %vm361, %v356, %v358
      %v363 = vsel %vm361, %v358, %v360
      %366 = vst [vmem:[#allocation2 + $0x10] sm:$0xf] %v362
      %367 = vst [vmem:[#allocation2 + $0x18] sm:$0xf] %v363
      %368 = vrot.lane.b32.xlu0 %v315, 16
      %v369 = vpop.permute.xlu0 %368
      %v370 = vrot.slane %v369, 4
      %vm371 = vcmask 130048
      %v372 = vsel %vm371, %v370, %v369
      %v375 = vmul.f32 %v272, %v372
      %v376 = vmul.f32 %v273, %v370
      %v379 = vcombine.low %v375, %v375
      %v380 = vcombine.low %v376, %v376
      %381 = vrot.lane.b32.xlu0 %v379, 112
      %v382 = vpop.permute.xlu0 %381
      %383 = vrot.lane.b32.xlu0 %v375, 112
      %v384 = vpop.permute.xlu0 %383
      %385 = vrot.lane.b32.xlu0 %v380, 112
      %v386 = vpop.permute.xlu0 %385
      %vm387 = vcmask 916480
      %v388 = vsel %vm387, %v382, %v384
      %v389 = vsel %vm387, %v384, %v386
      %392 = vst [vmem:[#allocation2 + $0x10] sm:$0xf0] %v388
      %393 = vst [vmem:[#allocation2 + $0x18] sm:$0xf0] %v389
      %v394 = vcombine.high %v272, %v272
      %395 = vrot.lane.b32.xlu0 %v272, 111
      %v396 = vpop.permute.xlu0 %395
      %397 = vrot.lane.b32.xlu0 %v394, 111
      %v398 = vpop.permute.xlu0 %397
      %399 = vrot.lane.b32.xlu0 %v273, 111
      %v400 = vpop.permute.xlu0 %399
      %vm401 = vcmask 908288
      %v402 = vsel %vm401, %v396, %v398
      %v403 = vsel %vm401, %v398, %v400
      %406 = vst [vmem:[#allocation2 + $0x20] sm:$0xf] %v402
      %407 = vst [vmem:[#allocation2 + $0x28] sm:$0xf] %v403
      %408 = vrot.lane.b32.xlu0 %v342, 18
      %v409 = vpop.permute.xlu0 %408
      %v410 = vrot.slane %v409, 4
      %vm411 = vcmask 146432
      %v412 = vsel %vm411, %v410, %v409
      %v415 = vmul.f32 %v272, %v412
      %v416 = vmul.f32 %v273, %v410
      %v419 = vcombine.low %v415, %v415
      %v420 = vcombine.low %v416, %v416
      %421 = vrot.lane.b32.xlu0 %v419, 110
      %v422 = vpop.permute.xlu0 %421
      %423 = vrot.lane.b32.xlu0 %v415, 110
      %v424 = vpop.permute.xlu0 %423
      %425 = vrot.lane.b32.xlu0 %v420, 110
      %v426 = vpop.permute.xlu0 %425
      %vm427 = vcmask 900096
      %v428 = vsel %vm427, %v422, %v424
      %v429 = vsel %vm427, %v424, %v426
      %432 = vst [vmem:[#allocation2 + $0x20] sm:$0xf0] %v428
      %433 = vst [vmem:[#allocation2 + $0x28] sm:$0xf0] %v429
      %434 = vrot.lane.b32.xlu0 %v315, 32
      %v435 = vpop.permute.xlu0 %434
      %v436 = vrot.slane %v435, 4
      %vm437 = vcmask 261120
      %v438 = vsel %vm437, %v436, %v435
      %v441 = vmul.f32 %v272, %v438
      %v442 = vmul.f32 %v273, %v436
      %v445 = vcombine.high %v441, %v441
      %446 = vrot.lane.b32.xlu0 %v441, 96
      %v447 = vpop.permute.xlu0 %446
      %448 = vrot.lane.b32.xlu0 %v445, 96
      %v449 = vpop.permute.xlu0 %448
      %450 = vrot.lane.b32.xlu0 %v442, 96
      %v451 = vpop.permute.xlu0 %450
      %vm452 = vcmask 785408
      %v453 = vsel %vm452, %v447, %v449
      %v454 = vsel %vm452, %v449, %v451
      %457 = vst [vmem:[#allocation2 + $0x30] sm:$0xf] %v453
      %458 = vst [vmem:[#allocation2 + $0x38] sm:$0xf] %v454
      %459 = vrot.lane.b32.xlu0 %v325, 95
      %v460 = vpop.permute.xlu0 %459
      %461 = vrot.lane.b32.xlu0 %v272, 95
      %v462 = vpop.permute.xlu0 %461
      %463 = vrot.lane.b32.xlu0 %v326, 95
      %v464 = vpop.permute.xlu0 %463
      %vm465 = vcmask 777216
      %v466 = vsel %vm465, %v460, %v462
      %v467 = vsel %vm465, %v462, %v464
      %470 = vst [vmem:[#allocation2 + $0x30] sm:$0xf0] %v466
      %471 = vst [vmem:[#allocation2 + $0x38] sm:$0xf0] %v467
      %472 = vrot.lane.b32.xlu0 %v342, 34
      %v473 = vpop.permute.xlu0 %472
      %v474 = vrot.slane %v473, 4
      %vm475 = vcmask 277504
      %v476 = vsel %vm475, %v474, %v473
      %v479 = vmul.f32 %v272, %v476
      %v480 = vmul.f32 %v273, %v474
      %v483 = vcombine.high %v479, %v479
      %484 = vrot.lane.b32.xlu0 %v479, 94
      %v485 = vpop.permute.xlu0 %484
      %486 = vrot.lane.b32.xlu0 %v483, 94
      %v487 = vpop.permute.xlu0 %486
      %488 = vrot.lane.b32.xlu0 %v480, 94
      %v489 = vpop.permute.xlu0 %488
      %vm490 = vcmask 769024
      %v491 = vsel %vm490, %v485, %v487
      %v492 = vsel %vm490, %v487, %v489
      %495 = vst [vmem:[#allocation2 + $0x40] sm:$0xf] %v491
      %496 = vst [vmem:[#allocation2 + $0x48] sm:$0xf] %v492
      %v497 = vld [vmem:[%s1] sm:$0xff]
      %v498 = vld [vmem:[%s1 + $0x8] sm:$0xff]
      %v499 = vld [vmem:[#allocation2] sm:$0xff]
      %v500 = vld [vmem:[#allocation2 + $0x8] sm:$0xff]
      %v501 = vld [vmem:[#allocation2 + $0x10] sm:$0xff]
      %v502 = vld [vmem:[#allocation2 + $0x18] sm:$0xff]
      %v503 = vld [vmem:[#allocation2 + $0x20] sm:$0xff]
      %v504 = vld [vmem:[#allocation2 + $0x28] sm:$0xff]
      %v505 = vld [vmem:[#allocation2 + $0x30] sm:$0xff]
      %v506 = vld [vmem:[#allocation2 + $0x38] sm:$0xff]
      %v507 = vld [vmem:[#allocation2 + $0x40] sm:$0xf]
      %v508 = vld [vmem:[#allocation2 + $0x48] sm:$0xf]
      %v509 = vld [vmem:[%s3] sm:$0xff]
      %v510 = vld [vmem:[%s3 + $0x8] sm:$0xff]
      %512 = vset.pattern.permute.xlu0 0
      %513 = vperm.xlu0 %512, %v509
      %v514 = vpop.permute.xlu0 %513
      %517 = vset.pattern.permute.xlu0 0
      %518 = vperm.xlu0 %517, %v510
      %v519 = vpop.permute.xlu0 %518
      %vm521 = vcmask 293888
      %v523 = vsel %vm521, %v497, 0
      %v526 = vsel %vm521, %v498, 0
      %vm528 = vcmask 1043456
      %v530 = vsel %vm528, %v507, 0
      %v533 = vsel %vm528, %v508, 0
      %535 = vmatprep.subr.mxu0 %v500
      %536 = vmatpush1.msra.mxu0 %v499
      %537 = vmatprep.subr.mxu0 %v502
      %538 = vmatpush1.msra.mxu0 %v501
      %539 = vmatprep.subr.mxu0 %v504
      %540 = vmatpush1.msra.mxu0 %v503
      %541 = vmatprep.subr.mxu0 %v506
      %542 = vmatpush1.msra.mxu0 %v505
      %543 = vmatprep.subr.mxu0 %v533
      %544 = vmatpush1.msra.mxu0 %v530
      %545 = vmatprep.subr.mxu0 0.0
      %546 = vmatpush1.msra.mxu0 0.0
      %547 = vmatprep.subr.mxu0 0.0
      %548 = vmatpush1.msra.mxu0 0.0
      %549 = vmatprep.subr.mxu0 0.0
      %550 = vmatpush1.msra.mxu0 0.0
      %551 = vmatprep.subr.mxu0 0.0
      %552 = vmatpush1.msra.mxu0 0.0
      %553 = vmatprep.subr.mxu0 0.0
      %554 = vmatpush1.msra.mxu0 0.0
      %555 = vmatprep.subr.mxu0 0.0
      %556 = vmatpush1.msra.mxu0 0.0
      %557 = vmatprep.subr.mxu0 0.0
      %558 = vmatpush1.msra.mxu0 0.0
      %559 = vmatprep.subr.mxu0 0.0
      %560 = vmatpush1.msra.mxu0 0.0
      %561 = vmatprep.subr.mxu0 0.0
      %562 = vmatpush1.msra.mxu0 0.0
      %563 = vmatprep.subr.mxu0 0.0
      %564 = vmatpush1.msra.mxu0 0.0
      %565 = vmatprep.subr.mxu0 0.0
      %566 = vmatpush1.msra.mxu0 0.0
      %567 = vmatprep.subr.mxu0 0.0
      %568 = vmatpush1.msra.mxu0 0.0
      %569 = vmatprep.subr.mxu0 0.0
      %570 = vmatpush1.msra.mxu0 0.0
      %571 = vmatprep.subr.mxu0 0.0
      %572 = vmatpush1.msra.mxu0 0.0
      %573 = vmatprep.subr.mxu0 0.0
      %574 = vmatpush1.msra.mxu0 0.0
      %575 = vmatprep.subr.mxu0 0.0
      %576 = vmatpush1.msra.mxu0 0.0
      %577 = vmatprep.subr.mxu0 0.0
      %578 = vmatpush1.msra.mxu0 0.0
      %579 = vmatprep.subr.mxu0 0.0
      %580 = vmatpush1.msra.mxu0 0.0
      %581 = vmatprep.subr.mxu0 0.0
      %582 = vmatpush1.msra.mxu0 0.0
      %583 = vmatprep.subr.mxu0 0.0
      %584 = vmatpush1.msra.mxu0 0.0
      %585 = vmatprep.subr.mxu0 0.0
      %586 = vmatpush1.msra.mxu0 0.0
      %587 = vmatprep.subr.mxu0 0.0
      %588 = vmatpush1.msra.mxu0 0.0
      %589 = vmatprep.subr.mxu0 0.0
      %590 = vmatpush1.msra.mxu0 0.0
      %591 = vmatprep.subr.mxu0 0.0
      %592 = vmatpush1.msra.mxu0 0.0
      %593 = vmatprep.subr.mxu0 0.0
      %594 = vmatpush1.msra.mxu0 0.0
      %595 = vmatprep.subr.mxu0 0.0
      %596 = vmatpush1.msra.mxu0 0.0
      %597 = vmatprep.subr.mxu0 0.0
      %598 = vmatpush1.msra.mxu0 0.0
      %599 = vmatprep.mubr.f32.mxu0 0.0
      %600 = vmatmul.mubr.f32.gmra.mrb[0].mxu0 %v523
      %v601 = vpop.f32.mrb[0].mxu0
      %v602 = vadd.f32 %v514, %v601
      %v603 = vpop.f32.mrb[0].mxu0
      %v604 = vadd.f32 %v514, %v603
      %605 = vmatprep.mubr.f32.mxu0 0.0
      %606 = vmatmul.mubr.f32.gmra.mrb[0].mxu0 %v526
      %v607 = vpop.f32.mrb[0].mxu0
      %v608 = vadd.f32 %v519, %v607
      %v609 = vpop.f32.mrb[0].mxu0
      %v610 = vadd.f32 %v519, %v609
      %611 = vdwg.mxu0
      %v612 = vadd.f32 %v602, %v608
      %v613 = vrot.slane %v612, 4
      %v614 = vadd.f32 %v612, %v613
      %v615 = vrot.slane %v614, 2
      %v616 = vadd.f32 %v614, %v615
      %v617 = vrot.slane %v616, 1
      %v618 = vadd.f32 %v616, %v617
      %v619 = vadd.f32 %v604, %v610
      %v620 = vrot.slane %v619, 4
      %v621 = vadd.f32 %v619, %v620
      %v622 = vrot.slane %v621, 2
      %v623 = vadd.f32 %v621, %v622
      %v624 = vrot.slane %v623, 1
      %v625 = vadd.f32 %v623, %v624
      %v626 = vmul.f32 %v602, %v602
      %v627 = vmul.f32 %v604, %v604
      %v628 = vmul.f32 %v608, %v608
      %v629 = vmul.f32 %v610, %v610
      %v630 = vadd.f32 %v626, %v628
      %v631 = vrot.slane %v630, 4
      %v632 = vadd.f32 %v630, %v631
      %v633 = vrot.slane %v632, 2
      %v634 = vadd.f32 %v632, %v633
      %v635 = vrot.slane %v634, 1
      %v636 = vadd.f32 %v634, %v635
      %v637 = vadd.f32 %v627, %v629
      %v638 = vrot.slane %v637, 4
      %v639 = vadd.f32 %v637, %v638
      %v640 = vrot.slane %v639, 2
      %v641 = vadd.f32 %v639, %v640
      %v642 = vrot.slane %v641, 1
      %v643 = vadd.f32 %v641, %v642
      %v644 = vmul.f32 %v618, 0.0625
      %v645 = vmul.f32 %v625, 0.0625
      %v646 = vmul.f32 %v644, 16.0
      %v647 = vmul.f32 %v645, 16.0
      %v648 = vmul.f32 %v646, %v644
      %v649 = vmul.f32 %v647, %v645
      %v650 = vsub.f32 %v636, %v648
      %v651 = vsub.f32 %v643, %v649
      %v652 = vmul.f32 %v650, 0.06666667
      %v653 = vmul.f32 %v651, 0.06666667
      %v654 = vrsqrt.pop %v652
      %v655 = vmul.f32 %v652, %v654
      %vm656 = vcmp.eq.f32.partialorder %v652, inf
      %v657 = vsel %vm656, %v652, %v655
      %vm658 = vcmp.eq.f32.partialorder %v652, 0.0
      %v659 = vand.u32 %v652, 2147483648
      %v660 = vsel %vm658, %v659, %v657
      %v661 = vrsqrt.pop %v653
      %v662 = vmul.f32 %v653, %v661
      %vm663 = vcmp.eq.f32.partialorder %v653, inf
      %v664 = vsel %vm663, %v653, %v662
      %vm665 = vcmp.eq.f32.partialorder %v653, 0.0
      %v666 = vand.u32 %v653, 2147483648
      %v667 = vsel %vm665, %v666, %v664
      %v668 = vadd.f32 %v660, 0.001
      %v669 = vadd.f32 %v667, 0.001
      %v670 = vrcp.pop %v668
      %v671 = vrcp.pop %v669
      %v672 = vsub.f32 %v602, %v644
      %v673 = vsub.f32 %v604, %v645
      %v674 = vsub.f32 %v608, %v644
      %v675 = vsub.f32 %v610, %v645
      %v676 = vmul.f32 %v672, %v670
      %v677 = vmul.f32 %v673, %v671
      %v678 = vmul.f32 %v674, %v670
      %v679 = vmul.f32 %v675, %v671
      %680 = vset.pattern.permute.xlu0 1
      %681 = vperm.xlu0 %680, %v509
      %v682 = vpop.permute.xlu0 %681
      %684 = vset.pattern.permute.xlu0 1
      %685 = vperm.xlu0 %684, %v510
      %v686 = vpop.permute.xlu0 %685
      %v688 = vmul.f32 %v676, %v682
      %v689 = vmul.f32 %v677, %v682
      %v690 = vmul.f32 %v678, %v686
      %v691 = vmul.f32 %v679, %v686
      %692 = vset.pattern.permute.xlu0 2
      %693 = vperm.xlu0 %692, %v509
      %v694 = vpop.permute.xlu0 %693
      %696 = vset.pattern.permute.xlu0 2
      %697 = vperm.xlu0 %696, %v510
      %v698 = vpop.permute.xlu0 %697
      %v700 = vadd.f32 %v688, %v694
      %v701 = vadd.f32 %v689, %v694
      %v702 = vadd.f32 %v690, %v698
      %v703 = vadd.f32 %v691, %v698
      %v704 = vmax.f32 %v700, 0.0
      %v705 = vmax.f32 %v701, 0.0
      %v706 = vmax.f32 %v702, 0.0
      %v707 = vmax.f32 %v703, 0.0
      %v708 = vld [vmem:[%s266] sm:$0xff]
      %v709 = vld [vmem:[%s266 + $0x8] sm:$0xff]
      %711 = vset.pattern.permute.xlu0 0
      %712 = vperm.xlu0 %711, %v708
      %v713 = vpop.permute.xlu0 %712
      %716 = vset.pattern.permute.xlu0 0
      %717 = vperm.xlu0 %716, %v709
      %v718 = vpop.permute.xlu0 %717
      %v720 = vmul.f32 %v704, %v713
      %v721 = vmul.f32 %v705, %v713
      %v722 = vmul.f32 %v706, %v718
      %v723 = vmul.f32 %v707, %v718
      %724 = vset.pattern.permute.xlu0 1
      %725 = vperm.xlu0 %724, %v708
      %v726 = vpop.permute.xlu0 %725
      %728 = vset.pattern.permute.xlu0 1
      %729 = vperm.xlu0 %728, %v709
      %v730 = vpop.permute.xlu0 %729
      %v732 = vadd.f32 %v720, %v726
      %v733 = vadd.f32 %v721, %v726
      %v734 = vadd.f32 %v722, %v730
      %v735 = vadd.f32 %v723, %v730
      %v736 = vadd.f32 %v732, %v733
      %737 = vadd.xlane.f32.xlu0 %v736
      %v738 = vpop.xlane.xlu0 %737
      %v739 = vadd.f32 %v734, %v735
      %740 = vadd.xlane.f32.xlu0 %v739
      %v741 = vpop.xlane.xlu0 %740
      %v742 = vmul.f32 %v738, 0.00390625
      %v743 = vmul.f32 %v741, 0.00390625
      %v744 = vmul.f32 %v742, %v509
      %v745 = vmul.f32 %v743, %v510
      %vm746 = vcmask 56360
      %v747 = vsel %vm746, %v744, 0.0
      %v748 = vsel %vm746, %v745, 0.0
      %v749 = vadd.f32 %v747, %v748
      %v750 = vrot.slane %v749, 4
      %v751 = vadd.f32 %v749, %v750
      %v752 = vrot.slane %v751, 2
      %v753 = vadd.f32 %v751, %v752
      %v754 = vrot.slane %v753, 1
      %v755 = vadd.f32 %v753, %v754
      %v756 = vld [vmem:[%s4] sm:$0x1]
      %v758 = vlaneseq
      %v759 = vshrl.u32 %v758, 7
      %v760 = vsub.s32 0, %v759
      %v761 = vrot.slane %v756, %v760
      %762 = vrot.lane.b32.xlu0 %v761, 5
      %v763 = vpop.permute.xlu0 %762
      %v765 = vadd.f32 %v755, %v763
      %v766 = vmax.f32 %v765, 0.0
      %v767 = vlaneseq
      %v768 = vshrl.u32 %v767, 7
      %v769 = vsub.s32 0, %v768
      %v770 = vrot.slane %v766, %v769
      %772 = vrot.lane.b32.xlu0 %v770, 2
      %v773 = vpop.permute.xlu0 %772
      %v775 = vmul.f32 %v509, %v773
      %v776 = vmul.f32 %v510, %v773
      %779 = vrot.lane.b32.xlu0 %v775, 121
      %v780 = vpop.permute.xlu0 %779
      %781 = vrot.lane.b32.xlu0 %v776, 121
      %v782 = vpop.permute.xlu0 %781
      %v785 = vsel %vm346, %v780, 0.0
      %786 = vadd.xlane.f32.xlu0 %v785
      %v787 = vpop.xlane.xlu0 %786
      %v788 = vsel %vm346, %v782, 0.0
      %789 = vadd.xlane.f32.xlu0 %v788
      %v790 = vpop.xlane.xlu0 %789
      %v791 = vadd.f32 %v787, %v509
      %v792 = vadd.f32 %v790, %v510
      %v793 = vxor.u32 %v791, 2147483648
      %v794 = vxor.u32 %v792, 2147483648
      %v795 = vmul.f32 %v793, 1.442695
      %v796 = vpow.pop %v795
      %v797 = vmul.f32 %v794, 1.442695
      %v798 = vpow.pop %v797
      %v799 = vadd.f32 %v796, 1.0
      %v800 = vadd.f32 %v798, 1.0
      %v801 = vrcp.pop %v799
      %v802 = vmul.f32 1.0, %v801
      %v803 = vrcp.pop %v800
      %v804 = vmul.f32 1.0, %v803
      %806 = vset.pattern.permute.xlu0 4
      %807 = vperm.xlu0 %806, %v802
      %v808 = vpop.permute.xlu0 %807
      %811 = vset.pattern.permute.xlu0 4
      %812 = vperm.xlu0 %811, %v804
      %v813 = vpop.permute.xlu0 %812
      %v815 = vmul.f32 %v732, %v808
      %v816 = vmul.f32 %v733, %v808
      %v817 = vmul.f32 %v734, %v813
      %v818 = vmul.f32 %v735, %v813
      %v819 = vld [vmem:[%s2] sm:$0xff]
      %v820 = vld [vmem:[%s2 + $0x8] sm:$0xff]
      %821 = vset.pattern.permute.xlu0 3
      %822 = vperm.xlu0 %821, %v509
      %v823 = vpop.permute.xlu0 %822
      %825 = vset.pattern.permute.xlu0 3
      %826 = vperm.xlu0 %825, %v510
      %v827 = vpop.permute.xlu0 %826
      %vm829 = vcmask 31744
      %v831 = vsel %vm829, %v819, 0
      %v834 = vsel %vm829, %v820, 0
      %v836 = vsel %vm528, %v402, 0
      %v838 = vsel %vm528, %v403, 0
      %840 = vmatprep.subr.mxu0 %v838
      %841 = vmatpush1.msra.mxu0 %v836
      %842 = vmatprep.subr.mxu0 0.0
      %843 = vmatpush1.msra.mxu0 0.0
      %844 = vmatprep.subr.mxu0 0.0
      %845 = vmatpush1.msra.mxu0 0.0
      %846 = vmatprep.subr.mxu0 0.0
      %847 = vmatpush1.msra.mxu0 0.0
      %848 = vmatprep.subr.mxu0 0.0
      %849 = vmatpush1.msra.mxu0 0.0
      %850 = vmatprep.subr.mxu0 0.0
      %851 = vmatpush1.msra.mxu0 0.0
      %852 = vmatprep.subr.mxu0 0.0
      %853 = vmatpush1.msra.mxu0 0.0
      %854 = vmatprep.subr.mxu0 0.0
      %855 = vmatpush1.msra.mxu0 0.0
      %856 = vmatprep.subr.mxu0 0.0
      %857 = vmatpush1.msra.mxu0 0.0
      %858 = vmatprep.subr.mxu0 0.0
      %859 = vmatpush1.msra.mxu0 0.0
      %860 = vmatprep.subr.mxu0 0.0
      %861 = vmatpush1.msra.mxu0 0.0
      %862 = vmatprep.subr.mxu0 0.0
      %863 = vmatpush1.msra.mxu0 0.0
      %864 = vmatprep.subr.mxu0 0.0
      %865 = vmatpush1.msra.mxu0 0.0
      %866 = vmatprep.subr.mxu0 0.0
      %867 = vmatpush1.msra.mxu0 0.0
      %868 = vmatprep.subr.mxu0 0.0
      %869 = vmatpush1.msra.mxu0 0.0
      %870 = vmatprep.subr.mxu0 0.0
      %871 = vmatpush1.msra.mxu0 0.0
      %872 = vmatprep.subr.mxu0 0.0
      %873 = vmatpush1.msra.mxu0 0.0
      %874 = vmatprep.subr.mxu0 0.0
      %875 = vmatpush1.msra.mxu0 0.0
      %876 = vmatprep.subr.mxu0 0.0
      %877 = vmatpush1.msra.mxu0 0.0
      %878 = vmatprep.subr.mxu0 0.0
      %879 = vmatpush1.msra.mxu0 0.0
      %880 = vmatprep.subr.mxu0 0.0
      %881 = vmatpush1.msra.mxu0 0.0
      %882 = vmatprep.subr.mxu0 0.0
      %883 = vmatpush1.msra.mxu0 0.0
      %884 = vmatprep.subr.mxu0 0.0
      %885 = vmatpush1.msra.mxu0 0.0
      %886 = vmatprep.subr.mxu0 0.0
      %887 = vmatpush1.msra.mxu0 0.0
      %888 = vmatprep.subr.mxu0 0.0
      %889 = vmatpush1.msra.mxu0 0.0
      %890 = vmatprep.subr.mxu0 0.0
      %891 = vmatpush1.msra.mxu0 0.0
      %892 = vmatprep.subr.mxu0 0.0
      %893 = vmatpush1.msra.mxu0 0.0
      %894 = vmatprep.subr.mxu0 0.0
      %895 = vmatpush1.msra.mxu0 0.0
      %896 = vmatprep.subr.mxu0 0.0
      %897 = vmatpush1.msra.mxu0 0.0
      %898 = vmatprep.subr.mxu0 0.0
      %899 = vmatpush1.msra.mxu0 0.0
      %900 = vmatprep.subr.mxu0 0.0
      %901 = vmatpush1.msra.mxu0 0.0
      %902 = vmatprep.subr.mxu0 0.0
      %903 = vmatpush1.msra.mxu0 0.0
      %904 = vmatprep.mubr.f32.mxu0 0.0
      %905 = vmatmul.mubr.f32.gmra.mrb[0].mxu0 %v831
      %v906 = vpop.f32.mrb[0].mxu0
      %v907 = vadd.f32 %v823, %v906
      %v908 = vpop.f32.mrb[0].mxu0
      %v909 = vadd.f32 %v823, %v908
      %910 = vmatprep.mubr.f32.mxu0 0.0
      %911 = vmatmul.mubr.f32.gmra.mrb[0].mxu0 %v834
      %v912 = vpop.f32.mrb[0].mxu0
      %v913 = vadd.f32 %v827, %v912
      %v914 = vpop.f32.mrb[0].mxu0
      %v915 = vadd.f32 %v827, %v914
      %916 = vdwg.mxu0
      %v917 = vadd.f32 %v815, %v907
      %v918 = vadd.f32 %v816, %v909
      %v919 = vadd.f32 %v817, %v913
      %v920 = vadd.f32 %v818, %v915
      %v921 = vmax.f32 %v917, 0.0
      %v922 = vmax.f32 %v918, 0.0
      %v923 = vmax.f32 %v919, 0.0
      %v924 = vmax.f32 %v920, 0.0
      %925 = vst [vmem:[%s271] sm:$0xff] %v921
      %926 = vst [vmem:[%s271 + $0x8] sm:$0xff] %v922
      %927 = vst [vmem:[%s271 + $0x10] sm:$0xff] %v923
      %928 = vst [vmem:[%s271 + $0x18] sm:$0xff] %v924
      %p929 = scmp.lt.s32.totalorder %s17, 1
      %s930 = scalar_select %p929, %s17, 1
      %s931 = smul.addr %s930, 4
      %s932 = smul.addr %s931, 8
      %s933 = scalar_lea.vmem %s6, %s932
      // Predicated region
      $region45: #{filtering_block.1} parent=43 // pred_check
        %p934 = pneg %p171
      $region46: #{filtering_block.1} parent=43 // pred_check_branch
        %936 = sbr.rel (%p934) target = $region48
      $region47: #{filtering_block.1} parent=43 // pred_region
        _
      $region48: #{filtering_block.1} parent=43 // pred_fallthru
        _
    $region44: #{filtering_block.1} parent=5 // pred_fallthru
      _
    %p937 = scmp.le.s32.totalorder 2, %s12
    // Predicated region
    $region49: #{filtering_block.1} parent=5 // pred_check
      %p938 = pneg %p937
    $region50: #{filtering_block.1} parent=5 // pred_check_branch
      %940 = sbr.rel (%p938) target = $region52
    $region51: #{filtering_block.1} parent=5 // pred_region
      %s941 = ssub.s32 %s12, 2
      // Predicated region
      $region53: #{filtering_block.1} parent=51 // pred_check
        %p942 = pneg %p177
      $region54: #{filtering_block.1} parent=51 // pred_check_branch
        %944 = sbr.rel (%p942) target = $region56
      $region55: #{filtering_block.1} parent=51 // pred_region
        %p945 = scmp.lt.s32.totalorder %s18, 1
        %s946 = scalar_select %p945, %s18, 1
        %s947 = smul.addr %s946, 4
        %s948 = smul.addr %s947, 8
        %s949 = scalar_lea.vmem %s6, %s948
      $region56: #{filtering_block.1} parent=51 // pred_fallthru
        _
    $region52: #{filtering_block.1} parent=5 // pred_fallthru
      _
  $region6: #{filtering_block.1} parent=0 // loop_footer
    %s16 = sadd.s32 1, %s12
  $region7: #{filtering_block.1} parent=0 // loop_footer_branch
    %11 = sbr.rel target = $region3
  $region8: #{filtering_block.1} parent=0 // loop_exit
    _

</llo_original>
